<compile_context>
chip_gen: v5e
topology: v5e:2x2
jax: 0.10.0
libtpu: 0.0.40
codegen_flags: <defaults>
</compile_context>

<pallas_src>
import jax
import jax.numpy as jnp
from jax import lax
from jax.experimental import pallas as pl
from jax.experimental.pallas import tpu as pltpu  # noqa: F401  (imported per convention)

# ----------------------------- configuration --------------------------------
B = 2          # batch
S = 8          # sequence length
D_EMB = 32     # d_embedding
D_HID = 64     # d_hidden
H = 4          # heads
QD = 8         # per-head query dim
KD = 8         # per-head key dim
VD = 8         # per-head value dim
assert QD == KD == VD, "packing assumes equal per-head dims"
G = H * B      # grouped (head, batch) axis, g = h*B + b (head-major, torch cat/chunk order)
N = B * S      # flattened (batch, seq) rows
MASK = True
NEG_INF = float(-2 ** 32 + 1)
LN_EPS = 1e-5

# sublane-row indices inside the packed (16, 128) bias / LayerNorm slab
R_BQ, R_BK, R_BV, R_BO = 0, 1, 2, 3
R_B1, R_B2 = 4, 5
R_G1, R_BE1, R_G2, R_BE2 = 6, 7, 8, 9
VEC_ROWS, VEC_LANES = 16, 128


# ------------------------------- Pallas kernel ------------------------------
def encoder_kernel(q_ref, k_ref, v_ref, w_attn_ref, w_ffn_ref, vec_ref,
                   out_ref, score_ref):
    xq = q_ref[...]                                   # (N, D_EMB)
    xk = k_ref[...]
    xv = v_ref[...]

    # bias / LayerNorm rows (row slices, all starting at lane 0 -> no rotates)
    bq = vec_ref[R_BQ:R_BQ + 1, :D_EMB]
    bk = vec_ref[R_BK:R_BK + 1, :D_EMB]
    bv = vec_ref[R_BV:R_BV + 1, :D_EMB]
    bo = vec_ref[R_BO:R_BO + 1, :D_EMB]
    b1 = vec_ref[R_B1:R_B1 + 1, :D_HID]
    b2 = vec_ref[R_B2:R_B2 + 1, :D_EMB]
    g1 = vec_ref[R_G1:R_G1 + 1, :D_EMB]
    be1 = vec_ref[R_BE1:R_BE1 + 1, :D_EMB]
    g2 = vec_ref[R_G2:R_G2 + 1, :D_EMB]
    be2 = vec_ref[R_BE2:R_BE2 + 1, :D_EMB]

    # ---- fused Q/K/V projections: one (N,32)@(32,32) matmul each (contraction 32) ----
    qp = jnp.dot(xq, w_attn_ref[0], preferred_element_type=jnp.float32) + bq   # (N, H*QD)
    kp = jnp.dot(xk, w_attn_ref[1], preferred_element_type=jnp.float32) + bk
    vp = jnp.dot(xv, w_attn_ref[2], preferred_element_type=jnp.float32) + bv

    qp3 = qp.reshape(B, S, H * QD)        # tile-aligned leading split -> free
    kp3 = kp.reshape(B, S, H * KD)
    vp3 = vp.reshape(B, S, H * VD)

    # ---- per-head scores (3-D einsums batched over B), assembled head-major g = h*B + b ----
    sc_heads = []
    for h in range(H):
        qh = qp3[:, :, h * QD:(h + 1) * QD]           # (B, S, QD) lane slice
        kh = kp3[:, :, h * KD:(h + 1) * KD]
        sc_heads.append(jnp.einsum('bsq,btq->bst', qh, kh,
                                   preferred_element_type=jnp.float32))
    sc = jnp.concatenate(sc_heads, axis=0)            # (G, S, S), head-major

    if MASK:
        row = lax.broadcasted_iota(jnp.int32, (G, S, S), 1)
        col = lax.broadcasted_iota(jnp.int32, (G, S, S), 2)
        sc = jnp.where(row >= col, sc, jnp.float32(NEG_INF))

    sc = sc - jnp.max(sc, axis=-1, keepdims=True)
    e = jnp.exp(sc)
    p = e * pl.reciprocal(jnp.sum(e, axis=-1, keepdims=True), approx=True)     # (G, S, S)

    # single full-ref store; already in the final (H*B, S, S) ordering
    score_ref[...] = p

    # ---- per-head context, heads concatenated on lanes ----
    ctx_heads = []
    for h in range(H):
        vh = vp3[:, :, h * VD:(h + 1) * VD]           # (B, S, VD)
        ph = p[h * B:(h + 1) * B]                     # (B, S, S) leading slice
        ctx_heads.append(jnp.einsum('bst,btv->bsv', ph, vh,
                                    preferred_element_type=jnp.float32))
    attn = jnp.concatenate(ctx_heads, axis=-1).reshape(N, H * VD)   # (N, 32), leading merge

    # fused out-projection + head-sum: one (N,32)@(32,32) matmul (contraction 32)
    mha = jnp.dot(attn, w_attn_ref[3], preferred_element_type=jnp.float32) + bo  # (N, D_EMB)

    # ---- dropout = identity (eval); residual + LayerNorm 1 ----
    x = mha + xq
    mu = jnp.mean(x, axis=-1, keepdims=True)
    var = jnp.mean((x - mu) * (x - mu), axis=-1, keepdims=True)
    x1 = (x - mu) * lax.rsqrt(var + LN_EPS) * g1 + be1

    # ---- feed-forward: Conv1d(kernel_size=1) == per-position linear ----
    w1 = w_ffn_ref[:D_EMB, :]                         # (32, 64)
    w2 = w_ffn_ref[D_EMB:D_EMB + D_HID, :D_EMB]       # (64, 32), un-transposed
    hmid = jnp.maximum(jnp.dot(x1, w1, preferred_element_type=jnp.float32) + b1, 0.0)
    y = jnp.dot(hmid, w2, preferred_element_type=jnp.float32) + b2

    # ---- residual + LayerNorm 2; single full-ref store ----
    z = x1 + y
    mu2 = jnp.mean(z, axis=-1, keepdims=True)
    var2 = jnp.mean((z - mu2) * (z - mu2), axis=-1, keepdims=True)
    out2 = (z - mu2) * lax.rsqrt(var2 + LN_EPS) * g2 + be2          # (N, D_EMB)
    out_ref[...] = out2.reshape(B, S, D_EMB)          # tile-aligned leading split -> free


# ------------------------------- wrapper -------------------------------------
@jax.jit
def encoder_forward(query, key, value, w_attn, w_ffn, vec):
    # (B,S,D) -> (B*S,D) reshapes on HBM arrays are free metadata changes.
    qf = query.reshape(N, D_EMB)
    kf = key.reshape(N, D_EMB)
    vf = value.reshape(N, D_EMB)
    out, score = pl.pallas_call(
        encoder_kernel,
        out_shape=(
            jax.ShapeDtypeStruct((B, S, D_EMB), jnp.float32),
            jax.ShapeDtypeStruct((G, S, S), jnp.float32),   # head-major, == (H*B, S, S)
        ),
    )(qf, kf, vf, w_attn, w_ffn, vec)
    return out, score


# --------------------------- parameter handling -------------------------------
def make_params(rng):
    def nxt():
        nonlocal rng
        rng, sub = jax.random.split(rng)
        return sub

    def lin(din, dout, scale=0.05):
        w = jax.random.normal(nxt(), (din, dout), jnp.float32) * scale
        b = jax.random.normal(nxt(), (1, dout), jnp.float32) * scale
        return w, b

    p = {}
    p["wq"], p["bq"] = lin(D_EMB, H * QD)
    p["wk"], p["bk"] = lin(D_EMB, H * KD)
    p["wv"], p["bv"] = lin(D_EMB, H * VD)
    p["wo"], p["bo"] = lin(H * VD, D_EMB)
    p["g1"] = jnp.ones((1, D_EMB), jnp.float32)
    p["be1"] = jnp.zeros((1, D_EMB), jnp.float32)
    p["w1"], p["b1"] = lin(D_EMB, D_HID)   # Conv1d(d_emb -> d_hid, k=1)
    p["w2"], p["b2"] = lin(D_HID, D_EMB)   # Conv1d(d_hid -> d_emb, k=1)
    p["g2"] = jnp.ones((1, D_EMB), jnp.float32)
    p["be2"] = jnp.zeros((1, D_EMB), jnp.float32)
    return p


def pack_params(p):
    """One-time packing of the 16 parameter tensors into 3 kernel slabs."""
    # attention weights: (4, 32, 32) = [Wq, Wk, Wv, Wo]  (Wo already (H*VD, D_EMB))
    w_attn = jnp.stack([p["wq"], p["wk"], p["wv"], p["wo"]], axis=0)

    # FFN weights: rows 0:32 = W1 (32,64); rows 32:96 = W2 (64,32) lane-padded to 64
    w2_pad = jnp.pad(p["w2"], ((0, 0), (0, D_HID - D_EMB)))            # (64, 64)
    w_ffn = jnp.concatenate([p["w1"], w2_pad], axis=0)                 # (96, 64)

    # bias / LayerNorm slab: one vector per sublane row, lane-padded to 128
    def row(v):
        v = v.reshape(1, -1)
        return jnp.pad(v, ((0, 0), (0, VEC_LANES - v.shape[1])))

    vec = jnp.concatenate(
        [row(p["bq"]), row(p["bk"]), row(p["bv"]), row(p["bo"]),
         row(p["b1"]), row(p["b2"]),
         row(p["g1"]), row(p["be1"]), row(p["g2"]), row(p["be2"])], axis=0)
    vec = jnp.pad(vec, ((0, VEC_ROWS - vec.shape[0]), (0, 0)))         # (16, 128)
    return w_attn, w_ffn, vec


# ------------------------- pure-JAX reference (check) ------------------------
def encoder_ref(query, key, value, p):
    def ln(x, g, b):
        mu = jnp.mean(x, axis=-1, keepdims=True)
        var = jnp.mean((x - mu) ** 2, axis=-1, keepdims=True)
        return (x - mu) / jnp.sqrt(var + LN_EPS) * g + b

    Qp = query @ p["wq"] + p["bq"]
    Kp = key @ p["wk"] + p["bk"]
    Vp = value @ p["wv"] + p["bv"]
    Q = jnp.concatenate(jnp.split(Qp, H, axis=-1), axis=0)   # (H*B, S, QD)
    K = jnp.concatenate(jnp.split(Kp, H, axis=-1), axis=0)
    V = jnp.concatenate(jnp.split(Vp, H, axis=-1), axis=0)
    score = Q @ jnp.swapaxes(K, -1, -2)
    if MASK:
        m = jnp.tril(jnp.ones((S, S)))
        score = jnp.where(m > 0, score, NEG_INF)
    score = jax.nn.softmax(score, axis=-1)
    attn = jnp.concatenate(jnp.split(score @ V, H, axis=0), axis=-1)
    mha = attn @ p["wo"] + p["bo"]
    x = ln(mha + query, p["g1"], p["be1"])
    y = jnp.maximum(x @ p["w1"] + p["b1"], 0.0) @ p["w2"] + p["b2"]
    return ln(x + y, p["g2"], p["be2"]), score


# ----------------------------------- main ------------------------------------
if __name__ == "__main__":
    key0 = jax.random.PRNGKey(0)
    k1, k2, k3, k4 = jax.random.split(key0, 4)
    query = jax.random.normal(k1, (B, S, D_EMB), jnp.float32)
    key_in = jax.random.normal(k2, (B, S, D_EMB), jnp.float32)
    value = jax.random.normal(k3, (B, S, D_EMB), jnp.float32)
    params = make_params(k4)
    w_attn, w_ffn, vec = pack_params(params)     # one-time packing -> 3 parameter DMAs per call

    out, score = encoder_forward(query, key_in, value, w_attn, w_ffn, vec)
    jax.block_until_ready((out, score))

    out_exp, score_exp = encoder_ref(query, key_in, value, params)
    # tolerance loosened vs f32-exact because the softmax denominator uses the
    # EUP approximate reciprocal
    assert jnp.allclose(out, out_exp, atol=2e-3, rtol=2e-3), "output mismatch"
    assert jnp.allclose(score, score_exp, atol=2e-3, rtol=2e-3), "score mismatch"

    print("KERNEL_OK")
</pallas_src>

<mosaic_0001>
module attributes {stable_mosaic.version = 11 : i64} {
  func.func @encoder_kernel(%arg0: memref<16x32xf32, #tpu.memory_space<vmem>>, %arg1: memref<16x32xf32, #tpu.memory_space<vmem>>, %arg2: memref<16x32xf32, #tpu.memory_space<vmem>>, %arg3: memref<4x32x32xf32, #tpu.memory_space<vmem>>, %arg4: memref<96x64xf32, #tpu.memory_space<vmem>>, %arg5: memref<16x128xf32, #tpu.memory_space<vmem>>, %arg6: memref<2x8x32xf32, #tpu.memory_space<vmem>>, %arg7: memref<8x8x8xf32, #tpu.memory_space<vmem>>) attributes {dimension_semantics = [], scalar_prefetch = 0 : i64, scratch_operands = 0 : i64, tpu.core_type = #tpu.core_type<tc>} {
    %c0 = arith.constant 0 : index
    %c0_0 = arith.constant 0 : index
    %0 = vector.load %arg0[%c0, %c0_0] : memref<16x32xf32, #tpu.memory_space<vmem>>, vector<16x32xf32>
    %c0_1 = arith.constant 0 : index
    %c0_2 = arith.constant 0 : index
    %1 = vector.load %arg1[%c0_1, %c0_2] : memref<16x32xf32, #tpu.memory_space<vmem>>, vector<16x32xf32>
    %c0_3 = arith.constant 0 : index
    %c0_4 = arith.constant 0 : index
    %2 = vector.load %arg2[%c0_3, %c0_4] : memref<16x32xf32, #tpu.memory_space<vmem>>, vector<16x32xf32>
    %c0_5 = arith.constant 0 : index
    %c0_6 = arith.constant 0 : index
    %3 = vector.load %arg5[%c0_5, %c0_6] : memref<16x128xf32, #tpu.memory_space<vmem>>, vector<1x32xf32>
    %c1 = arith.constant 1 : index
    %c0_7 = arith.constant 0 : index
    %4 = vector.load %arg5[%c1, %c0_7] : memref<16x128xf32, #tpu.memory_space<vmem>>, vector<1x32xf32>
    %c2 = arith.constant 2 : index
    %c0_8 = arith.constant 0 : index
    %5 = vector.load %arg5[%c2, %c0_8] : memref<16x128xf32, #tpu.memory_space<vmem>>, vector<1x32xf32>
    %c3 = arith.constant 3 : index
    %c0_9 = arith.constant 0 : index
    %6 = vector.load %arg5[%c3, %c0_9] : memref<16x128xf32, #tpu.memory_space<vmem>>, vector<1x32xf32>
    %c4 = arith.constant 4 : index
    %c0_10 = arith.constant 0 : index
    %7 = vector.load %arg5[%c4, %c0_10] : memref<16x128xf32, #tpu.memory_space<vmem>>, vector<1x64xf32>
    %c5 = arith.constant 5 : index
    %c0_11 = arith.constant 0 : index
    %8 = vector.load %arg5[%c5, %c0_11] : memref<16x128xf32, #tpu.memory_space<vmem>>, vector<1x32xf32>
    %c6 = arith.constant 6 : index
    %c0_12 = arith.constant 0 : index
    %9 = vector.load %arg5[%c6, %c0_12] : memref<16x128xf32, #tpu.memory_space<vmem>>, vector<1x32xf32>
    %c7 = arith.constant 7 : index
    %c0_13 = arith.constant 0 : index
    %10 = vector.load %arg5[%c7, %c0_13] : memref<16x128xf32, #tpu.memory_space<vmem>>, vector<1x32xf32>
    %c8 = arith.constant 8 : index
    %c0_14 = arith.constant 0 : index
    %11 = vector.load %arg5[%c8, %c0_14] : memref<16x128xf32, #tpu.memory_space<vmem>>, vector<1x32xf32>
    %c9 = arith.constant 9 : index
    %c0_15 = arith.constant 0 : index
    %12 = vector.load %arg5[%c9, %c0_15] : memref<16x128xf32, #tpu.memory_space<vmem>>, vector<1x32xf32>
    %c0_16 = arith.constant 0 : index
    %c0_17 = arith.constant 0 : index
    %c0_18 = arith.constant 0 : index
    %13 = vector.load %arg3[%c0_16, %c0_17, %c0_18] : memref<4x32x32xf32, #tpu.memory_space<vmem>>, vector<1x32x32xf32>
    %14 = vector.shape_cast %13 : vector<1x32x32xf32> to vector<32x32xf32>
    %cst = arith.constant dense<0.000000e+00> : vector<16x32xf32>
    %15 = tpu.matmul %0, %14, %cst {dimension_numbers = #tpu.dot_dimension_numbers<[1], [0], [0], [1], [0, 0, 1, 1], [], []>} : vector<16x32xf32>, vector<32x32xf32>, vector<16x32xf32> -> vector<16x32xf32>
    %16 = vector.broadcast %3 : vector<1x32xf32> to vector<16x32xf32>
    %17 = arith.addf %15, %16 : vector<16x32xf32>
    %c1_19 = arith.constant 1 : index
    %c0_20 = arith.constant 0 : index
    %c0_21 = arith.constant 0 : index
    %18 = vector.load %arg3[%c1_19, %c0_20, %c0_21] : memref<4x32x32xf32, #tpu.memory_space<vmem>>, vector<1x32x32xf32>
    %19 = vector.shape_cast %18 : vector<1x32x32xf32> to vector<32x32xf32>
    %cst_22 = arith.constant dense<0.000000e+00> : vector<16x32xf32>
    %20 = tpu.matmul %1, %19, %cst_22 {dimension_numbers = #tpu.dot_dimension_numbers<[1], [0], [0], [1], [0, 0, 1, 1], [], []>} : vector<16x32xf32>, vector<32x32xf32>, vector<16x32xf32> -> vector<16x32xf32>
    %21 = vector.broadcast %4 : vector<1x32xf32> to vector<16x32xf32>
    %22 = arith.addf %20, %21 : vector<16x32xf32>
    %c2_23 = arith.constant 2 : index
    %c0_24 = arith.constant 0 : index
    %c0_25 = arith.constant 0 : index
    %23 = vector.load %arg3[%c2_23, %c0_24, %c0_25] : memref<4x32x32xf32, #tpu.memory_space<vmem>>, vector<1x32x32xf32>
    %24 = vector.shape_cast %23 : vector<1x32x32xf32> to vector<32x32xf32>
    %cst_26 = arith.constant dense<0.000000e+00> : vector<16x32xf32>
    %25 = tpu.matmul %2, %24, %cst_26 {dimension_numbers = #tpu.dot_dimension_numbers<[1], [0], [0], [1], [0, 0, 1, 1], [], []>} : vector<16x32xf32>, vector<32x32xf32>, vector<16x32xf32> -> vector<16x32xf32>
    %26 = vector.broadcast %5 : vector<1x32xf32> to vector<16x32xf32>
    %27 = arith.addf %25, %26 : vector<16x32xf32>
    %28 = vector.shape_cast %17 : vector<16x32xf32> to vector<2x8x32xf32>
    %29 = vector.shape_cast %22 : vector<16x32xf32> to vector<2x8x32xf32>
    %30 = vector.shape_cast %27 : vector<16x32xf32> to vector<2x8x32xf32>
    %31 = vector.extract_strided_slice %28 {offsets = [0, 0, 0], sizes = [2, 8, 8], strides = [1, 1, 1]} : vector<2x8x32xf32> to vector<2x8x8xf32>
    %32 = vector.extract_strided_slice %29 {offsets = [0, 0, 0], sizes = [2, 8, 8], strides = [1, 1, 1]} : vector<2x8x32xf32> to vector<2x8x8xf32>
    "tpu.trace_start"() <{level = 10 : i32, message = "bsq,btq->bst"}> : () -> ()
    %cst_27 = arith.constant dense<0.000000e+00> : vector<2x8x8xf32>
    %33 = tpu.matmul %31, %32, %cst_27 {dimension_numbers = #tpu.dot_dimension_numbers<[2], [2], [1], [1], [0, 0, 0, 1, 1, 1], [0], [0]>} : vector<2x8x8xf32>, vector<2x8x8xf32>, vector<2x8x8xf32> -> vector<2x8x8xf32>
    "tpu.trace_stop"() : () -> ()
    %34 = vector.extract_strided_slice %28 {offsets = [0, 0, 8], sizes = [2, 8, 8], strides = [1, 1, 1]} : vector<2x8x32xf32> to vector<2x8x8xf32>
    %35 = vector.extract_strided_slice %29 {offsets = [0, 0, 8], sizes = [2, 8, 8], strides = [1, 1, 1]} : vector<2x8x32xf32> to vector<2x8x8xf32>
    "tpu.trace_start"() <{level = 10 : i32, message = "bsq,btq->bst"}> : () -> ()
    %cst_28 = arith.constant dense<0.000000e+00> : vector<2x8x8xf32>
    %36 = tpu.matmul %34, %35, %cst_28 {dimension_numbers = #tpu.dot_dimension_numbers<[2], [2], [1], [1], [0, 0, 0, 1, 1, 1], [0], [0]>} : vector<2x8x8xf32>, vector<2x8x8xf32>, vector<2x8x8xf32> -> vector<2x8x8xf32>
    "tpu.trace_stop"() : () -> ()
    %37 = vector.extract_strided_slice %28 {offsets = [0, 0, 16], sizes = [2, 8, 8], strides = [1, 1, 1]} : vector<2x8x32xf32> to vector<2x8x8xf32>
    %38 = vector.extract_strided_slice %29 {offsets = [0, 0, 16], sizes = [2, 8, 8], strides = [1, 1, 1]} : vector<2x8x32xf32> to vector<2x8x8xf32>
    "tpu.trace_start"() <{level = 10 : i32, message = "bsq,btq->bst"}> : () -> ()
    %cst_29 = arith.constant dense<0.000000e+00> : vector<2x8x8xf32>
    %39 = tpu.matmul %37, %38, %cst_29 {dimension_numbers = #tpu.dot_dimension_numbers<[2], [2], [1], [1], [0, 0, 0, 1, 1, 1], [0], [0]>} : vector<2x8x8xf32>, vector<2x8x8xf32>, vector<2x8x8xf32> -> vector<2x8x8xf32>
    "tpu.trace_stop"() : () -> ()
    %40 = vector.extract_strided_slice %28 {offsets = [0, 0, 24], sizes = [2, 8, 8], strides = [1, 1, 1]} : vector<2x8x32xf32> to vector<2x8x8xf32>
    %41 = vector.extract_strided_slice %29 {offsets = [0, 0, 24], sizes = [2, 8, 8], strides = [1, 1, 1]} : vector<2x8x32xf32> to vector<2x8x8xf32>
    "tpu.trace_start"() <{level = 10 : i32, message = "bsq,btq->bst"}> : () -> ()
    %cst_30 = arith.constant dense<0.000000e+00> : vector<2x8x8xf32>
    %42 = tpu.matmul %40, %41, %cst_30 {dimension_numbers = #tpu.dot_dimension_numbers<[2], [2], [1], [1], [0, 0, 0, 1, 1, 1], [0], [0]>} : vector<2x8x8xf32>, vector<2x8x8xf32>, vector<2x8x8xf32> -> vector<2x8x8xf32>
    "tpu.trace_stop"() : () -> ()
    %43 = tpu.concatenate %33, %36, %39, %42 in 0 : vector<2x8x8xf32>, vector<2x8x8xf32>, vector<2x8x8xf32>, vector<2x8x8xf32> -> vector<8x8x8xf32>
    %44 = tpu.iota {dimensions = array<i32: 1>} : vector<8x8x8xi32>
    %45 = tpu.iota {dimensions = array<i32: 2>} : vector<8x8x8xi32>
    %46 = arith.cmpi sge, %44, %45 : vector<8x8x8xi32>
    %cst_31 = arith.constant -4.2949673E+9 : f32
    %47 = vector.broadcast %cst_31 : f32 to vector<8x8x8xf32>
    %48 = arith.select %46, %43, %47 : vector<8x8x8xi1>, vector<8x8x8xf32>
    %cst_32 = arith.constant dense<0xFF800000> : vector<8x8xf32>
    %49 = vector.multi_reduction <maximumf>, %48, %cst_32 [2] : vector<8x8x8xf32> to vector<8x8xf32>
    %50 = vector.shape_cast %49 : vector<8x8xf32> to vector<8x8x1xf32>
    %51 = vector.broadcast %50 : vector<8x8x1xf32> to vector<8x8x8xf32>
    %52 = arith.subf %48, %51 : vector<8x8x8xf32>
    %53 = math.exp %52 : vector<8x8x8xf32>
    %cst_33 = arith.constant dense<0.000000e+00> : vector<8x8xf32>
    %54 = vector.multi_reduction <add>, %53, %cst_33 [2] : vector<8x8x8xf32> to vector<8x8xf32>
    %55 = vector.shape_cast %54 : vector<8x8xf32> to vector<8x8x1xf32>
    %56 = tpu.reciprocal %55 {approx = true} : vector<8x8x1xf32> -> vector<8x8x1xf32>
    %57 = vector.broadcast %56 : vector<8x8x1xf32> to vector<8x8x8xf32>
    %58 = arith.mulf %53, %57 : vector<8x8x8xf32>
    %c0_34 = arith.constant 0 : index
    %c0_35 = arith.constant 0 : index
    %c0_36 = arith.constant 0 : index
    %59 = vector.load %arg7[%c0_34, %c0_35, %c0_36] : memref<8x8x8xf32, #tpu.memory_space<vmem>>, vector<8x8x8xf32>
    tpu.vector_store %arg7[%c0_34, %c0_35, %c0_36], %58 {strides = array<i32>} : memref<8x8x8xf32, #tpu.memory_space<vmem>>, vector<8x8x8xf32>,
    %60 = vector.extract_strided_slice %30 {offsets = [0, 0, 0], sizes = [2, 8, 8], strides = [1, 1, 1]} : vector<2x8x32xf32> to vector<2x8x8xf32>
    %61 = vector.extract_strided_slice %58 {offsets = [0, 0, 0], sizes = [2, 8, 8], strides = [1, 1, 1]} : vector<8x8x8xf32> to vector<2x8x8xf32>
    "tpu.trace_start"() <{level = 10 : i32, message = "bst,btv->bsv"}> : () -> ()
    %cst_37 = arith.constant dense<0.000000e+00> : vector<2x8x8xf32>
    %62 = tpu.matmul %61, %60, %cst_37 {dimension_numbers = #tpu.dot_dimension_numbers<[2], [1], [1], [2], [0, 0, 0, 1, 1, 2], [0], [0]>} : vector<2x8x8xf32>, vector<2x8x8xf32>, vector<2x8x8xf32> -> vector<2x8x8xf32>
    "tpu.trace_stop"() : () -> ()
    %63 = vector.extract_strided_slice %30 {offsets = [0, 0, 8], sizes = [2, 8, 8], strides = [1, 1, 1]} : vector<2x8x32xf32> to vector<2x8x8xf32>
    %64 = vector.extract_strided_slice %58 {offsets = [2, 0, 0], sizes = [2, 8, 8], strides = [1, 1, 1]} : vector<8x8x8xf32> to vector<2x8x8xf32>
    "tpu.trace_start"() <{level = 10 : i32, message = "bst,btv->bsv"}> : () -> ()
    %cst_38 = arith.constant dense<0.000000e+00> : vector<2x8x8xf32>
    %65 = tpu.matmul %64, %63, %cst_38 {dimension_numbers = #tpu.dot_dimension_numbers<[2], [1], [1], [2], [0, 0, 0, 1, 1, 2], [0], [0]>} : vector<2x8x8xf32>, vector<2x8x8xf32>, vector<2x8x8xf32> -> vector<2x8x8xf32>
    "tpu.trace_stop"() : () -> ()
    %66 = vector.extract_strided_slice %30 {offsets = [0, 0, 16], sizes = [2, 8, 8], strides = [1, 1, 1]} : vector<2x8x32xf32> to vector<2x8x8xf32>
    %67 = vector.extract_strided_slice %58 {offsets = [4, 0, 0], sizes = [2, 8, 8], strides = [1, 1, 1]} : vector<8x8x8xf32> to vector<2x8x8xf32>
    "tpu.trace_start"() <{level = 10 : i32, message = "bst,btv->bsv"}> : () -> ()
    %cst_39 = arith.constant dense<0.000000e+00> : vector<2x8x8xf32>
    %68 = tpu.matmul %67, %66, %cst_39 {dimension_numbers = #tpu.dot_dimension_numbers<[2], [1], [1], [2], [0, 0, 0, 1, 1, 2], [0], [0]>} : vector<2x8x8xf32>, vector<2x8x8xf32>, vector<2x8x8xf32> -> vector<2x8x8xf32>
    "tpu.trace_stop"() : () -> ()
    %69 = vector.extract_strided_slice %30 {offsets = [0, 0, 24], sizes = [2, 8, 8], strides = [1, 1, 1]} : vector<2x8x32xf32> to vector<2x8x8xf32>
    %70 = vector.extract_strided_slice %58 {offsets = [6, 0, 0], sizes = [2, 8, 8], strides = [1, 1, 1]} : vector<8x8x8xf32> to vector<2x8x8xf32>
    "tpu.trace_start"() <{level = 10 : i32, message = "bst,btv->bsv"}> : () -> ()
    %cst_40 = arith.constant dense<0.000000e+00> : vector<2x8x8xf32>
    %71 = tpu.matmul %70, %69, %cst_40 {dimension_numbers = #tpu.dot_dimension_numbers<[2], [1], [1], [2], [0, 0, 0, 1, 1, 2], [0], [0]>} : vector<2x8x8xf32>, vector<2x8x8xf32>, vector<2x8x8xf32> -> vector<2x8x8xf32>
    "tpu.trace_stop"() : () -> ()
    %72 = tpu.concatenate %62, %65, %68, %71 in 2 : vector<2x8x8xf32>, vector<2x8x8xf32>, vector<2x8x8xf32>, vector<2x8x8xf32> -> vector<2x8x32xf32>
    %73 = vector.shape_cast %72 : vector<2x8x32xf32> to vector<16x32xf32>
    %c3_41 = arith.constant 3 : index
    %c0_42 = arith.constant 0 : index
    %c0_43 = arith.constant 0 : index
    %74 = vector.load %arg3[%c3_41, %c0_42, %c0_43] : memref<4x32x32xf32, #tpu.memory_space<vmem>>, vector<1x32x32xf32>
    %75 = vector.shape_cast %74 : vector<1x32x32xf32> to vector<32x32xf32>
    %cst_44 = arith.constant dense<0.000000e+00> : vector<16x32xf32>
    %76 = tpu.matmul %73, %75, %cst_44 {dimension_numbers = #tpu.dot_dimension_numbers<[1], [0], [0], [1], [0, 0, 1, 1], [], []>} : vector<16x32xf32>, vector<32x32xf32>, vector<16x32xf32> -> vector<16x32xf32>
    %77 = vector.broadcast %6 : vector<1x32xf32> to vector<16x32xf32>
    %78 = arith.addf %76, %77 : vector<16x32xf32>
    %79 = arith.addf %78, %0 : vector<16x32xf32>
    %cst_45 = arith.constant dense<0.000000e+00> : vector<16xf32>
    %80 = vector.multi_reduction <add>, %79, %cst_45 [1] : vector<16x32xf32> to vector<16xf32>
    %81 = vector.shape_cast %80 : vector<16xf32> to vector<16x1xf32>
    %cst_46 = arith.constant 3.200000e+01 : f32
    %82 = vector.broadcast %cst_46 : f32 to vector<16x1xf32>
    %83 = arith.divf %81, %82 : vector<16x1xf32>
    %84 = vector.broadcast %83 : vector<16x1xf32> to vector<16x32xf32>
    %85 = arith.subf %79, %84 : vector<16x32xf32>
    %86 = vector.broadcast %83 : vector<16x1xf32> to vector<16x32xf32>
    %87 = arith.subf %79, %86 : vector<16x32xf32>
    %88 = arith.mulf %85, %87 : vector<16x32xf32>
    %cst_47 = arith.constant dense<0.000000e+00> : vector<16xf32>
    %89 = vector.multi_reduction <add>, %88, %cst_47 [1] : vector<16x32xf32> to vector<16xf32>
    %90 = vector.shape_cast %89 : vector<16xf32> to vector<16x1xf32>
    %cst_48 = arith.constant 3.200000e+01 : f32
    %91 = vector.broadcast %cst_48 : f32 to vector<16x1xf32>
    %92 = arith.divf %90, %91 : vector<16x1xf32>
    %93 = vector.broadcast %83 : vector<16x1xf32> to vector<16x32xf32>
    %94 = arith.subf %79, %93 : vector<16x32xf32>
    %cst_49 = arith.constant 9.99999974E-6 : f32
    %95 = vector.broadcast %cst_49 : f32 to vector<16x1xf32>
    %96 = arith.addf %92, %95 : vector<16x1xf32>
    %97 = math.rsqrt %96 : vector<16x1xf32>
    %98 = vector.broadcast %97 : vector<16x1xf32> to vector<16x32xf32>
    %99 = arith.mulf %94, %98 : vector<16x32xf32>
    %100 = vector.broadcast %9 : vector<1x32xf32> to vector<16x32xf32>
    %101 = arith.mulf %99, %100 : vector<16x32xf32>
    %102 = vector.broadcast %10 : vector<1x32xf32> to vector<16x32xf32>
    %103 = arith.addf %101, %102 : vector<16x32xf32>
    %c0_50 = arith.constant 0 : index
    %c0_51 = arith.constant 0 : index
    %104 = vector.load %arg4[%c0_50, %c0_51] : memref<96x64xf32, #tpu.memory_space<vmem>>, vector<32x64xf32>
    %c32 = arith.constant 32 : index
    %c0_52 = arith.constant 0 : index
    %105 = vector.load %arg4[%c32, %c0_52] : memref<96x64xf32, #tpu.memory_space<vmem>>, vector<64x32xf32>
    %cst_53 = arith.constant dense<0.000000e+00> : vector<16x64xf32>
    %106 = tpu.matmul %103, %104, %cst_53 {dimension_numbers = #tpu.dot_dimension_numbers<[1], [0], [0], [1], [0, 0, 1, 1], [], []>} : vector<16x32xf32>, vector<32x64xf32>, vector<16x64xf32> -> vector<16x64xf32>
    %107 = vector.broadcast %7 : vector<1x64xf32> to vector<16x64xf32>
    %108 = arith.addf %106, %107 : vector<16x64xf32>
    %cst_54 = arith.constant 0.000000e+00 : f32
    %109 = vector.broadcast %cst_54 : f32 to vector<16x64xf32>
    %110 = arith.maximumf %108, %109 : vector<16x64xf32>
    %cst_55 = arith.constant dense<0.000000e+00> : vector<16x32xf32>
    %111 = tpu.matmul %110, %105, %cst_55 {dimension_numbers = #tpu.dot_dimension_numbers<[1], [0], [0], [1], [0, 0, 1, 1], [], []>} : vector<16x64xf32>, vector<64x32xf32>, vector<16x32xf32> -> vector<16x32xf32>
    %112 = vector.broadcast %8 : vector<1x32xf32> to vector<16x32xf32>
    %113 = arith.addf %111, %112 : vector<16x32xf32>
    %114 = arith.addf %103, %113 : vector<16x32xf32>
    %cst_56 = arith.constant dense<0.000000e+00> : vector<16xf32>
    %115 = vector.multi_reduction <add>, %114, %cst_56 [1] : vector<16x32xf32> to vector<16xf32>
    %116 = vector.shape_cast %115 : vector<16xf32> to vector<16x1xf32>
    %cst_57 = arith.constant 3.200000e+01 : f32
    %117 = vector.broadcast %cst_57 : f32 to vector<16x1xf32>
    %118 = arith.divf %116, %117 : vector<16x1xf32>
    %119 = vector.broadcast %118 : vector<16x1xf32> to vector<16x32xf32>
    %120 = arith.subf %114, %119 : vector<16x32xf32>
    %121 = vector.broadcast %118 : vector<16x1xf32> to vector<16x32xf32>
    %122 = arith.subf %114, %121 : vector<16x32xf32>
    %123 = arith.mulf %120, %122 : vector<16x32xf32>
    %cst_58 = arith.constant dense<0.000000e+00> : vector<16xf32>
    %124 = vector.multi_reduction <add>, %123, %cst_58 [1] : vector<16x32xf32> to vector<16xf32>
    %125 = vector.shape_cast %124 : vector<16xf32> to vector<16x1xf32>
    %cst_59 = arith.constant 3.200000e+01 : f32
    %126 = vector.broadcast %cst_59 : f32 to vector<16x1xf32>
    %127 = arith.divf %125, %126 : vector<16x1xf32>
    %128 = vector.broadcast %118 : vector<16x1xf32> to vector<16x32xf32>
    %129 = arith.subf %114, %128 : vector<16x32xf32>
    %cst_60 = arith.constant 9.99999974E-6 : f32
    %130 = vector.broadcast %cst_60 : f32 to vector<16x1xf32>
    %131 = arith.addf %127, %130 : vector<16x1xf32>
    %132 = math.rsqrt %131 : vector<16x1xf32>
    %133 = vector.broadcast %132 : vector<16x1xf32> to vector<16x32xf32>
    %134 = arith.mulf %129, %133 : vector<16x32xf32>
    %135 = vector.broadcast %11 : vector<1x32xf32> to vector<16x32xf32>
    %136 = arith.mulf %134, %135 : vector<16x32xf32>
    %137 = vector.broadcast %12 : vector<1x32xf32> to vector<16x32xf32>
    %138 = arith.addf %136, %137 : vector<16x32xf32>
    %139 = vector.shape_cast %138 : vector<16x32xf32> to vector<2x8x32xf32>
    %c0_61 = arith.constant 0 : index
    %c0_62 = arith.constant 0 : index
    %c0_63 = arith.constant 0 : index
    %140 = vector.load %arg6[%c0_61, %c0_62, %c0_63] : memref<2x8x32xf32, #tpu.memory_space<vmem>>, vector<2x8x32xf32>
    tpu.vector_store %arg6[%c0_61, %c0_62, %c0_63], %139 {strides = array<i32>} : memref<2x8x32xf32, #tpu.memory_space<vmem>>, vector<2x8x32xf32>,
    return
  }
}

</mosaic_0001>

<llo_original>
// kernel: encoder_forward.1
$region0: #{encoder_forward.1}
  #allocation0 [shape = 'u32[]', space=smem, size = 0x4, offset = 0x4, fixed_abs, tag = 'smem constant byte address 0x4 - core index']
  #allocation1 [shape = 'u32[72,128]{1,0:T(1,128)}', space=vmem, size = 0x9000, scoped, tag = 'internal scratch']
  %s0 = inlined_call_operand.vmem [shape: f32[16,32], index: 0, kind: input, shape index: {}]
  %s1 = inlined_call_operand.vmem [shape: f32[16,32], index: 1, kind: input, shape index: {}]
  %s2 = inlined_call_operand.hbm [shape: f32[16,32], index: 2, kind: input, shape index: {}]
  %s3 = inlined_call_operand.vmem [shape: f32[4,32,32], index: 3, kind: input, shape index: {}]
  %s4 = inlined_call_operand.vmem [shape: f32[96,64], index: 4, kind: input, shape index: {}]
  %s5 = inlined_call_operand.hbm [shape: f32[16,128], index: 5, kind: input, shape index: {}]
  %s6 = inlined_call_operand.hbm [shape: f32[2,8,32], index: 6, kind: output, shape index: {0}]
  %s7 = inlined_call_operand.hbm [shape: f32[8,8,8], index: 7, kind: output, shape index: {1}]
  %8 = xla_tuple %s6, %s7
  %s9 = sld [smem:[#allocation0]]
  $region50: #{encoder_forward.1} parent=0
    _
  %s11 = ssub.s32 1, %s9
  %s12 = scalar_select 0, %s11, %s9
  $region1: #{encoder_forward.1} parent=0
    #allocation2 [shape = 'u8[8192]{0}', space=vmem, size = 0x2000, scoped, tag = 'input window, operand 2, single buffered']
    #allocation3 [shape = 's32[1]{0}', space=sflag, size = 0x4, scoped, tag = 'scoped memory for encoder_forward.1']
    #allocation4 [shape = 's32[1]{0}', space=sflag, size = 0x4, scoped, tag = 'scoped memory for encoder_forward.1']
    #allocation5 [shape = 'u8[8192]{0}', space=vmem, size = 0x2000, scoped, tag = 'input window, operand 5, single buffered']
    #allocation6 [shape = 's32[1]{0}', space=sflag, size = 0x4, scoped, tag = 'scoped memory for encoder_forward.1']
    #allocation7 [shape = 'u8[8192]{0}', space=vmem, size = 0x2000, scoped, tag = 'output window, operand 0, single buffered']
    #allocation8 [shape = 'u8[32768]{0}', space=vmem, size = 0x8000, scoped, tag = 'output window, operand 1, single buffered']
    #allocation9 [shape = 's32[1]{0}', space=sflag, size = 0x4, scoped, tag = 'scoped memory for encoder_forward.1']
    %13 = vsyncpa [#allocation3], 0
    %14 = vsyncpa [#allocation6], 0
    %15 = vsyncpa [#allocation4], 0
    %16 = vsyncpa [#allocation9], 0
    // Predicated region
    $region2: #{encoder_forward.1} parent=1 // pred_check
      _
    $region3: #{encoder_forward.1} parent=1 // pred_check_branch
      %18 = sbr.rel (0) target = $region5
    $region4: #{encoder_forward.1} parent=1 // pred_region
      _
    $region5: #{encoder_forward.1} parent=1 // pred_fallthru
      _
    // Predicated region
    $region6: #{encoder_forward.1} parent=1 // pred_check
      _
    $region7: #{encoder_forward.1} parent=1 // pred_check_branch
      %20 = sbr.rel (0) target = $region9
    $region8: #{encoder_forward.1} parent=1 // pred_region
      _
    $region9: #{encoder_forward.1} parent=1 // pred_fallthru
      _
    // Predicated region
    $region10: #{encoder_forward.1} parent=1 // pred_check
      _
    $region11: #{encoder_forward.1} parent=1 // pred_check_branch
      %22 = sbr.rel (0) target = $region13
    $region12: #{encoder_forward.1} parent=1 // pred_region
      %24 = vsyncadd [#allocation3], 0
      %s25 = sshll.u32 %s2, 4
      %s26 = int_to_ptr.hbm [resolvable:$true] %s25
      %s27 = sshll.u32 [#allocation2], 4
      %s28 = int_to_ptr.vmem [resolvable:$true] %s27
      %33 = dma.hbm_to_vmem [thread:$0]  %s26, 256, %s28, [#allocation3], 128, 128, 8
    $region13: #{encoder_forward.1} parent=1 // pred_fallthru
      _
    // Predicated region
    $region14: #{encoder_forward.1} parent=1 // pred_check
      _
    $region15: #{encoder_forward.1} parent=1 // pred_check_branch
      %35 = sbr.rel (0) target = $region17
    $region16: #{encoder_forward.1} parent=1 // pred_region
      _
    $region17: #{encoder_forward.1} parent=1 // pred_fallthru
      _
    // Predicated region
    $region18: #{encoder_forward.1} parent=1 // pred_check
      _
    $region19: #{encoder_forward.1} parent=1 // pred_check_branch
      %37 = sbr.rel (0) target = $region21
    $region20: #{encoder_forward.1} parent=1 // pred_region
      _
    $region21: #{encoder_forward.1} parent=1 // pred_fallthru
      _
    // Predicated region
    $region22: #{encoder_forward.1} parent=1 // pred_check
      _
    $region23: #{encoder_forward.1} parent=1 // pred_check_branch
      %39 = sbr.rel (0) target = $region25
    $region24: #{encoder_forward.1} parent=1 // pred_region
      %41 = vsyncadd [#allocation6], 0
      %s42 = sshll.u32 %s5, 4
      %s43 = int_to_ptr.hbm [resolvable:$true] %s42
      %s44 = sshll.u32 [#allocation5], 4
      %s45 = int_to_ptr.vmem [resolvable:$true] %s44
      %50 = dma.hbm_to_vmem [thread:$0]  %s43, 256, %s45, [#allocation6], 128, 128, 8
    $region25: #{encoder_forward.1} parent=1 // pred_fallthru
      _
    // Predicated region
    $region26: #{encoder_forward.1} parent=1 // pred_check
      _
    $region27: #{encoder_forward.1} parent=1 // pred_check_branch
      %52 = sbr.rel (0) target = $region29
    $region28: #{encoder_forward.1} parent=1 // pred_region
      %54 = dma.done [#allocation3], 256
    $region29: #{encoder_forward.1} parent=1 // pred_fallthru
      _
    // Predicated region
    $region30: #{encoder_forward.1} parent=1 // pred_check
      _
    $region31: #{encoder_forward.1} parent=1 // pred_check_branch
      %56 = sbr.rel (0) target = $region33
    $region32: #{encoder_forward.1} parent=1 // pred_region
      %58 = dma.done [#allocation6], 256
    $region33: #{encoder_forward.1} parent=1 // pred_fallthru
      _
    %v59 = vld [vmem:[%s0] sm:$0xff]
    %v60 = vld [vmem:[%s0 + $0x8] sm:$0xff]
    %v61 = vld [vmem:[%s1] sm:$0xff]
    %v62 = vld [vmem:[%s1 + $0x8] sm:$0xff]
    %v63 = vld [vmem:[#allocation2] sm:$0xff]
    %v64 = vld [vmem:[#allocation2 + $0x8] sm:$0xff]
    %v65 = vld [vmem:[#allocation5] sm:$0x1]
    %v66 = vld [vmem:[#allocation5 + $0x1] sm:$0x1]
    %v67 = vld [vmem:[#allocation5 + $0x2] sm:$0x1]
    %v68 = vld [vmem:[#allocation5 + $0x3] sm:$0x1]
    %v69 = vld [vmem:[#allocation5 + $0x4] sm:$0x1]
    %v70 = vld [vmem:[#allocation5 + $0x5] sm:$0x1]
    %v71 = vld [vmem:[#allocation5 + $0x6] sm:$0x1]
    %v72 = vld [vmem:[#allocation5 + $0x7] sm:$0x1]
    %v73 = vld [vmem:[#allocation5 + $0x8] sm:$0x1]
    %v74 = vld [vmem:[#allocation5 + $0x9] sm:$0x1]
    %v75 = vld [vmem:[%s3] sm:$0xff]
    %v76 = vld [vmem:[%s3 + $0x8] sm:$0xff]
    %v77 = vld [vmem:[%s3 + $0x10] sm:$0xff]
    %v78 = vld [vmem:[%s3 + $0x18] sm:$0xff]
    %v79 = vperm.slane %v65, 0
    %vm80 = vcmask 261120
    %v82 = vsel %vm80, %v59, 0
    %v85 = vsel %vm80, %v60, 0
    %87 = vmatpush.msra.mxu0 0.0
    %88 = vmatpush.msra.mxu0 0.0
    %89 = vmatpush.msra.mxu0 0.0
    %90 = vmatpush.msra.mxu0 0.0
    %91 = vmatpush.msra.mxu0 0.0
    %92 = vmatpush.msra.mxu0 0.0
    %93 = vmatpush.msra.mxu0 0.0
    %94 = vmatpush.msra.mxu0 0.0
    %95 = vmatpush.msra.mxu0 0.0
    %96 = vmatpush.msra.mxu0 0.0
    %97 = vmatpush.msra.mxu0 0.0
    %98 = vmatpush.msra.mxu0 0.0
    %99 = vmatpush.msra.mxu0 %v78
    %100 = vmatpush.msra.mxu0 %v77
    %101 = vmatpush.msra.mxu0 %v76
    %102 = vmatpush.msra.mxu0 %v75
    %103 = vmatmul.f32.gmra.mxu0 %v82
    %v104 = vpop.f32.mrf.mxu0
    %v105 = vadd.f32 %v79, %v104
    %106 = vmatmul.f32.gmra.mxu0 %v85
    %v107 = vpop.f32.mrf.mxu0
    %v108 = vadd.f32 %v79, %v107
    %109 = vdwg.mxu0
    %s110 = scalar_lea.vmem %s3, 32
    %v111 = vld [vmem:[%s110] sm:$0xff]
    %v112 = vld [vmem:[%s110 + $0x8] sm:$0xff]
    %v113 = vld [vmem:[%s110 + $0x10] sm:$0xff]
    %v114 = vld [vmem:[%s110 + $0x18] sm:$0xff]
    %v115 = vperm.slane %v66, 0
    %v117 = vsel %vm80, %v61, 0
    %v120 = vsel %vm80, %v62, 0
    %122 = vmatpush.msra.mxu0 0.0
    %123 = vmatpush.msra.mxu0 0.0
    %124 = vmatpush.msra.mxu0 0.0
    %125 = vmatpush.msra.mxu0 0.0
    %126 = vmatpush.msra.mxu0 0.0
    %127 = vmatpush.msra.mxu0 0.0
    %128 = vmatpush.msra.mxu0 0.0
    %129 = vmatpush.msra.mxu0 0.0
    %130 = vmatpush.msra.mxu0 0.0
    %131 = vmatpush.msra.mxu0 0.0
    %132 = vmatpush.msra.mxu0 0.0
    %133 = vmatpush.msra.mxu0 0.0
    %134 = vmatpush.msra.mxu0 %v114
    %135 = vmatpush.msra.mxu0 %v113
    %136 = vmatpush.msra.mxu0 %v112
    %137 = vmatpush.msra.mxu0 %v111
    %138 = vmatmul.f32.gmra.mxu0 %v117
    %v139 = vpop.f32.mrf.mxu0
    %v140 = vadd.f32 %v115, %v139
    %141 = vmatmul.f32.gmra.mxu0 %v120
    %v142 = vpop.f32.mrf.mxu0
    %v143 = vadd.f32 %v115, %v142
    %144 = vdwg.mxu0
    %s145 = scalar_lea.vmem %s3, 64
    %v146 = vld [vmem:[%s145] sm:$0xff]
    %v147 = vld [vmem:[%s145 + $0x8] sm:$0xff]
    %v148 = vld [vmem:[%s145 + $0x10] sm:$0xff]
    %v149 = vld [vmem:[%s145 + $0x18] sm:$0xff]
    %v150 = vperm.slane %v67, 0
    %v152 = vsel %vm80, %v63, 0
    %v155 = vsel %vm80, %v64, 0
    %157 = vmatpush.msra.mxu0 0.0
    %158 = vmatpush.msra.mxu0 0.0
    %159 = vmatpush.msra.mxu0 0.0
    %160 = vmatpush.msra.mxu0 0.0
    %161 = vmatpush.msra.mxu0 0.0
    %162 = vmatpush.msra.mxu0 0.0
    %163 = vmatpush.msra.mxu0 0.0
    %164 = vmatpush.msra.mxu0 0.0
    %165 = vmatpush.msra.mxu0 0.0
    %166 = vmatpush.msra.mxu0 0.0
    %167 = vmatpush.msra.mxu0 0.0
    %168 = vmatpush.msra.mxu0 0.0
    %169 = vmatpush.msra.mxu0 %v149
    %170 = vmatpush.msra.mxu0 %v148
    %171 = vmatpush.msra.mxu0 %v147
    %172 = vmatpush.msra.mxu0 %v146
    %173 = vmatmul.f32.gmra.mxu0 %v152
    %v174 = vpop.f32.mrf.mxu0
    %v175 = vadd.f32 %v150, %v174
    %176 = vmatmul.f32.gmra.mxu0 %v155
    %v177 = vpop.f32.mrf.mxu0
    %v178 = vadd.f32 %v150, %v177
    %179 = vdwg.mxu0
    %vm180 = vcmask 64512
    %v182 = vsel %vm180, %v105, 0
    %v185 = vsel %vm180, %v140, 0
    %187 = vmatpush.xpose.msra.mxu0 0.0
    %188 = vmatpush.xpose.msra.mxu0 0.0
    %189 = vmatpush.xpose.msra.mxu0 0.0
    %190 = vmatpush.xpose.msra.mxu0 0.0
    %191 = vmatpush.xpose.msra.mxu0 0.0
    %192 = vmatpush.xpose.msra.mxu0 0.0
    %193 = vmatpush.xpose.msra.mxu0 0.0
    %194 = vmatpush.xpose.msra.mxu0 0.0
    %195 = vmatpush.xpose.msra.mxu0 0.0
    %196 = vmatpush.xpose.msra.mxu0 0.0
    %197 = vmatpush.xpose.msra.mxu0 0.0
    %198 = vmatpush.xpose.msra.mxu0 0.0
    %199 = vmatpush.xpose.msra.mxu0 0.0
    %200 = vmatpush.xpose.msra.mxu0 0.0
    %201 = vmatpush.xpose.msra.mxu0 0.0
    %202 = vmatpush.xpose.msra.mxu0 %v185
    %203 = vmatmul.f32.gmra.mxu0 %v182
    %v204 = vpop.f32.mrf.mxu0
    %v205 = vadd.f32 0.0, %v204
    %206 = vdwg.mxu0
    %v208 = vsel %vm180, %v108, 0
    %v211 = vsel %vm180, %v143, 0
    %213 = vmatpush.xpose.msra.mxu0 0.0
    %214 = vmatpush.xpose.msra.mxu0 0.0
    %215 = vmatpush.xpose.msra.mxu0 0.0
    %216 = vmatpush.xpose.msra.mxu0 0.0
    %217 = vmatpush.xpose.msra.mxu0 0.0
    %218 = vmatpush.xpose.msra.mxu0 0.0
    %219 = vmatpush.xpose.msra.mxu0 0.0
    %220 = vmatpush.xpose.msra.mxu0 0.0
    %221 = vmatpush.xpose.msra.mxu0 0.0
    %222 = vmatpush.xpose.msra.mxu0 0.0
    %223 = vmatpush.xpose.msra.mxu0 0.0
    %224 = vmatpush.xpose.msra.mxu0 0.0
    %225 = vmatpush.xpose.msra.mxu0 0.0
    %226 = vmatpush.xpose.msra.mxu0 0.0
    %227 = vmatpush.xpose.msra.mxu0 0.0
    %228 = vmatpush.xpose.msra.mxu0 %v211
    %229 = vmatmul.f32.gmra.mxu0 %v208
    %v230 = vpop.f32.mrf.mxu0
    %v231 = vadd.f32 0.0, %v230
    %232 = vdwg.mxu0
    %233 = vrot.lane.b32.xlu0 %v105, 120
    %v234 = vpop.permute.xlu0 %233
    %235 = vrot.lane.b32.xlu0 %v140, 120
    %v236 = vpop.permute.xlu0 %235
    %v237 = vsel %vm180, %v234, 0
    %v239 = vsel %vm180, %v236, 0
    %241 = vmatpush.xpose.msra.mxu0 0.0
    %242 = vmatpush.xpose.msra.mxu0 0.0
    %243 = vmatpush.xpose.msra.mxu0 0.0
    %244 = vmatpush.xpose.msra.mxu0 0.0
    %245 = vmatpush.xpose.msra.mxu0 0.0
    %246 = vmatpush.xpose.msra.mxu0 0.0
    %247 = vmatpush.xpose.msra.mxu0 0.0
    %248 = vmatpush.xpose.msra.mxu0 0.0
    %249 = vmatpush.xpose.msra.mxu0 0.0
    %250 = vmatpush.xpose.msra.mxu0 0.0
    %251 = vmatpush.xpose.msra.mxu0 0.0
    %252 = vmatpush.xpose.msra.mxu0 0.0
    %253 = vmatpush.xpose.msra.mxu0 0.0
    %254 = vmatpush.xpose.msra.mxu0 0.0
    %255 = vmatpush.xpose.msra.mxu0 0.0
    %256 = vmatpush.xpose.msra.mxu0 %v239
    %257 = vmatmul.f32.gmra.mxu0 %v237
    %v258 = vpop.f32.mrf.mxu0
    %v259 = vadd.f32 0.0, %v258
    %260 = vdwg.mxu0
    %261 = vrot.lane.b32.xlu0 %v108, 120
    %v262 = vpop.permute.xlu0 %261
    %263 = vrot.lane.b32.xlu0 %v143, 120
    %v264 = vpop.permute.xlu0 %263
    %v265 = vsel %vm180, %v262, 0
    %v267 = vsel %vm180, %v264, 0
    %269 = vmatpush.xpose.msra.mxu0 0.0
    %270 = vmatpush.xpose.msra.mxu0 0.0
    %271 = vmatpush.xpose.msra.mxu0 0.0
    %272 = vmatpush.xpose.msra.mxu0 0.0
    %273 = vmatpush.xpose.msra.mxu0 0.0
    %274 = vmatpush.xpose.msra.mxu0 0.0
    %275 = vmatpush.xpose.msra.mxu0 0.0
    %276 = vmatpush.xpose.msra.mxu0 0.0
    %277 = vmatpush.xpose.msra.mxu0 0.0
    %278 = vmatpush.xpose.msra.mxu0 0.0
    %279 = vmatpush.xpose.msra.mxu0 0.0
    %280 = vmatpush.xpose.msra.mxu0 0.0
    %281 = vmatpush.xpose.msra.mxu0 0.0
    %282 = vmatpush.xpose.msra.mxu0 0.0
    %283 = vmatpush.xpose.msra.mxu0 0.0
    %284 = vmatpush.xpose.msra.mxu0 %v267
    %285 = vmatmul.f32.gmra.mxu0 %v265
    %v286 = vpop.f32.mrf.mxu0
    %v287 = vadd.f32 0.0, %v286
    %288 = vdwg.mxu0
    %289 = vrot.lane.b32.xlu0 %v105, 112
    %v290 = vpop.permute.xlu0 %289
    %291 = vrot.lane.b32.xlu0 %v140, 112
    %v292 = vpop.permute.xlu0 %291
    %v293 = vsel %vm180, %v290, 0
    %v295 = vsel %vm180, %v292, 0
    %297 = vmatpush.xpose.msra.mxu0 0.0
    %298 = vmatpush.xpose.msra.mxu0 0.0
    %299 = vmatpush.xpose.msra.mxu0 0.0
    %300 = vmatpush.xpose.msra.mxu0 0.0
    %301 = vmatpush.xpose.msra.mxu0 0.0
    %302 = vmatpush.xpose.msra.mxu0 0.0
    %303 = vmatpush.xpose.msra.mxu0 0.0
    %304 = vmatpush.xpose.msra.mxu0 0.0
    %305 = vmatpush.xpose.msra.mxu0 0.0
    %306 = vmatpush.xpose.msra.mxu0 0.0
    %307 = vmatpush.xpose.msra.mxu0 0.0
    %308 = vmatpush.xpose.msra.mxu0 0.0
    %309 = vmatpush.xpose.msra.mxu0 0.0
    %310 = vmatpush.xpose.msra.mxu0 0.0
    %311 = vmatpush.xpose.msra.mxu0 0.0
    %312 = vmatpush.xpose.msra.mxu0 %v295
    %313 = vmatmul.f32.gmra.mxu0 %v293
    %v314 = vpop.f32.mrf.mxu0
    %v315 = vadd.f32 0.0, %v314
    %316 = vdwg.mxu0
    %317 = vrot.lane.b32.xlu0 %v108, 112
    %v318 = vpop.permute.xlu0 %317
    %319 = vrot.lane.b32.xlu0 %v143, 112
    %v320 = vpop.permute.xlu0 %319
    %v321 = vsel %vm180, %v318, 0
    %v323 = vsel %vm180, %v320, 0
    %325 = vmatpush.xpose.msra.mxu0 0.0
    %326 = vmatpush.xpose.msra.mxu0 0.0
    %327 = vmatpush.xpose.msra.mxu0 0.0
    %328 = vmatpush.xpose.msra.mxu0 0.0
    %329 = vmatpush.xpose.msra.mxu0 0.0
    %330 = vmatpush.xpose.msra.mxu0 0.0
    %331 = vmatpush.xpose.msra.mxu0 0.0
    %332 = vmatpush.xpose.msra.mxu0 0.0
    %333 = vmatpush.xpose.msra.mxu0 0.0
    %334 = vmatpush.xpose.msra.mxu0 0.0
    %335 = vmatpush.xpose.msra.mxu0 0.0
    %336 = vmatpush.xpose.msra.mxu0 0.0
    %337 = vmatpush.xpose.msra.mxu0 0.0
    %338 = vmatpush.xpose.msra.mxu0 0.0
    %339 = vmatpush.xpose.msra.mxu0 0.0
    %340 = vmatpush.xpose.msra.mxu0 %v323
    %341 = vmatmul.f32.gmra.mxu0 %v321
    %v342 = vpop.f32.mrf.mxu0
    %v343 = vadd.f32 0.0, %v342
    %344 = vdwg.mxu0
    %345 = vrot.lane.b32.xlu0 %v105, 104
    %v346 = vpop.permute.xlu0 %345
    %347 = vrot.lane.b32.xlu0 %v140, 104
    %v348 = vpop.permute.xlu0 %347
    %v349 = vsel %vm180, %v346, 0
    %v351 = vsel %vm180, %v348, 0
    %353 = vmatpush.xpose.msra.mxu0 0.0
    %354 = vmatpush.xpose.msra.mxu0 0.0
    %355 = vmatpush.xpose.msra.mxu0 0.0
    %356 = vmatpush.xpose.msra.mxu0 0.0
    %357 = vmatpush.xpose.msra.mxu0 0.0
    %358 = vmatpush.xpose.msra.mxu0 0.0
    %359 = vmatpush.xpose.msra.mxu0 0.0
    %360 = vmatpush.xpose.msra.mxu0 0.0
    %361 = vmatpush.xpose.msra.mxu0 0.0
    %362 = vmatpush.xpose.msra.mxu0 0.0
    %363 = vmatpush.xpose.msra.mxu0 0.0
    %364 = vmatpush.xpose.msra.mxu0 0.0
    %365 = vmatpush.xpose.msra.mxu0 0.0
    %366 = vmatpush.xpose.msra.mxu0 0.0
    %367 = vmatpush.xpose.msra.mxu0 0.0
    %368 = vmatpush.xpose.msra.mxu0 %v351
    %369 = vmatmul.f32.gmra.mxu0 %v349
    %v370 = vpop.f32.mrf.mxu0
    %v371 = vadd.f32 0.0, %v370
    %372 = vdwg.mxu0
    %373 = vrot.lane.b32.xlu0 %v108, 104
    %v374 = vpop.permute.xlu0 %373
    %375 = vrot.lane.b32.xlu0 %v143, 104
    %v376 = vpop.permute.xlu0 %375
    %v377 = vsel %vm180, %v374, 0
    %v379 = vsel %vm180, %v376, 0
    %381 = vmatpush.xpose.msra.mxu0 0.0
    %382 = vmatpush.xpose.msra.mxu0 0.0
    %383 = vmatpush.xpose.msra.mxu0 0.0
    %384 = vmatpush.xpose.msra.mxu0 0.0
    %385 = vmatpush.xpose.msra.mxu0 0.0
    %386 = vmatpush.xpose.msra.mxu0 0.0
    %387 = vmatpush.xpose.msra.mxu0 0.0
    %388 = vmatpush.xpose.msra.mxu0 0.0
    %389 = vmatpush.xpose.msra.mxu0 0.0
    %390 = vmatpush.xpose.msra.mxu0 0.0
    %391 = vmatpush.xpose.msra.mxu0 0.0
    %392 = vmatpush.xpose.msra.mxu0 0.0
    %393 = vmatpush.xpose.msra.mxu0 0.0
    %394 = vmatpush.xpose.msra.mxu0 0.0
    %395 = vmatpush.xpose.msra.mxu0 0.0
    %396 = vmatpush.xpose.msra.mxu0 %v379
    %397 = vmatmul.f32.gmra.mxu0 %v377
    %v398 = vpop.f32.mrf.mxu0
    %v399 = vadd.f32 0.0, %v398
    %400 = vdwg.mxu0
    %v401 = vlaneseq
    %v402 = vshrl.u32 %v401, 7
    %v403 = vlaneseq
    %v404 = vand.u32 %v403, 127
    %vm405 = vcmp.ge.s32.totalorder %v402, %v404
    %v406 = vsel %vm405, %v205, -4.2949673e+09
    %v407 = vsel %vm405, %v231, -4.2949673e+09
    %v408 = vsel %vm405, %v259, -4.2949673e+09
    %v409 = vsel %vm405, %v287, -4.2949673e+09
    %v410 = vsel %vm405, %v315, -4.2949673e+09
    %v411 = vsel %vm405, %v343, -4.2949673e+09
    %v412 = vsel %vm405, %v371, -4.2949673e+09
    %v413 = vsel %vm405, %v399, -4.2949673e+09
    %v414 = vsel %vm180, %v406, -inf
    %415 = vmax.xlane.f32.xlu0 %v414
    %v416 = vpop.xlane.xlu0 %415
    %v417 = vsel %vm180, %v407, -inf
    %418 = vmax.xlane.f32.xlu0 %v417
    %v419 = vpop.xlane.xlu0 %418
    %v420 = vsel %vm180, %v408, -inf
    %421 = vmax.xlane.f32.xlu0 %v420
    %v422 = vpop.xlane.xlu0 %421
    %v423 = vsel %vm180, %v409, -inf
    %424 = vmax.xlane.f32.xlu0 %v423
    %v425 = vpop.xlane.xlu0 %424
    %v426 = vsel %vm180, %v410, -inf
    %427 = vmax.xlane.f32.xlu0 %v426
    %v428 = vpop.xlane.xlu0 %427
    %v429 = vsel %vm180, %v411, -inf
    %430 = vmax.xlane.f32.xlu0 %v429
    %v431 = vpop.xlane.xlu0 %430
    %v432 = vsel %vm180, %v412, -inf
    %433 = vmax.xlane.f32.xlu0 %v432
    %v434 = vpop.xlane.xlu0 %433
    %v435 = vsel %vm180, %v413, -inf
    %436 = vmax.xlane.f32.xlu0 %v435
    %v437 = vpop.xlane.xlu0 %436
    %v438 = vsub.f32 %v406, %v416
    %v439 = vsub.f32 %v407, %v419
    %v440 = vsub.f32 %v408, %v422
    %v441 = vsub.f32 %v409, %v425
    %v442 = vsub.f32 %v410, %v428
    %v443 = vsub.f32 %v411, %v431
    %v444 = vsub.f32 %v412, %v434
    %v445 = vsub.f32 %v413, %v437
    %v446 = vmul.f32 %v438, 1.442695
    %v447 = vpow.pop %v446
    %v448 = vmul.f32 %v439, 1.442695
    %v449 = vpow.pop %v448
    %v450 = vmul.f32 %v440, 1.442695
    %v451 = vpow.pop %v450
    %v452 = vmul.f32 %v441, 1.442695
    %v453 = vpow.pop %v452
    %v454 = vmul.f32 %v442, 1.442695
    %v455 = vpow.pop %v454
    %v456 = vmul.f32 %v443, 1.442695
    %v457 = vpow.pop %v456
    %v458 = vmul.f32 %v444, 1.442695
    %v459 = vpow.pop %v458
    %v460 = vmul.f32 %v445, 1.442695
    %v461 = vpow.pop %v460
    %v462 = vsel %vm180, %v447, 0.0
    %463 = vadd.xlane.f32.xlu0 %v462
    %v464 = vpop.xlane.xlu0 %463
    %v465 = vsel %vm180, %v449, 0.0
    %466 = vadd.xlane.f32.xlu0 %v465
    %v467 = vpop.xlane.xlu0 %466
    %v468 = vsel %vm180, %v451, 0.0
    %469 = vadd.xlane.f32.xlu0 %v468
    %v470 = vpop.xlane.xlu0 %469
    %v471 = vsel %vm180, %v453, 0.0
    %472 = vadd.xlane.f32.xlu0 %v471
    %v473 = vpop.xlane.xlu0 %472
    %v474 = vsel %vm180, %v455, 0.0
    %475 = vadd.xlane.f32.xlu0 %v474
    %v476 = vpop.xlane.xlu0 %475
    %v477 = vsel %vm180, %v457, 0.0
    %478 = vadd.xlane.f32.xlu0 %v477
    %v479 = vpop.xlane.xlu0 %478
    %v480 = vsel %vm180, %v459, 0.0
    %481 = vadd.xlane.f32.xlu0 %v480
    %v482 = vpop.xlane.xlu0 %481
    %v483 = vsel %vm180, %v461, 0.0
    %484 = vadd.xlane.f32.xlu0 %v483
    %v485 = vpop.xlane.xlu0 %484
    %v486 = vrcp.pop %v464
    %v487 = vrcp.pop %v467
    %v488 = vrcp.pop %v470
    %v489 = vrcp.pop %v473
    %v490 = vrcp.pop %v476
    %v491 = vrcp.pop %v479
    %v492 = vrcp.pop %v482
    %v493 = vrcp.pop %v485
    %v494 = vmul.f32 %v447, %v486
    %v495 = vmul.f32 %v449, %v487
    %v496 = vmul.f32 %v451, %v488
    %v497 = vmul.f32 %v453, %v489
    %v498 = vmul.f32 %v455, %v490
    %v499 = vmul.f32 %v457, %v491
    %v500 = vmul.f32 %v459, %v492
    %v501 = vmul.f32 %v461, %v493
    %502 = vst.msk [vmem:[#allocation8] sm:$0xff] %vm180, %v494
    %503 = vst.msk [vmem:[#allocation8 + $0x8] sm:$0xff] %vm180, %v495
    %504 = vst.msk [vmem:[#allocation8 + $0x10] sm:$0xff] %vm180, %v496
    %505 = vst.msk [vmem:[#allocation8 + $0x18] sm:$0xff] %vm180, %v497
    %506 = vst.msk [vmem:[#allocation8 + $0x20] sm:$0xff] %vm180, %v498
    %507 = vst.msk [vmem:[#allocation8 + $0x28] sm:$0xff] %vm180, %v499
    %508 = vst.msk [vmem:[#allocation8 + $0x30] sm:$0xff] %vm180, %v500
    %509 = vst.msk [vmem:[#allocation8 + $0x38] sm:$0xff] %vm180, %v501
    %v511 = vsel %vm180, %v494, 0
    %513 = vmatpush.msra.mxu0 0.0
    %514 = vmatpush.msra.mxu0 0.0
    %515 = vmatpush.msra.mxu0 0.0
    %516 = vmatpush.msra.mxu0 0.0
    %517 = vmatpush.msra.mxu0 0.0
    %518 = vmatpush.msra.mxu0 0.0
    %519 = vmatpush.msra.mxu0 0.0
    %520 = vmatpush.msra.mxu0 0.0
    %521 = vmatpush.msra.mxu0 0.0
    %522 = vmatpush.msra.mxu0 0.0
    %523 = vmatpush.msra.mxu0 0.0
    %524 = vmatpush.msra.mxu0 0.0
    %525 = vmatpush.msra.mxu0 0.0
    %526 = vmatpush.msra.mxu0 0.0
    %527 = vmatpush.msra.mxu0 0.0
    %528 = vmatpush.msra.mxu0 %v175
    %529 = vmatmul.f32.gmra.mxu0 %v511
    %v530 = vpop.f32.mrf.mxu0
    %v531 = vadd.f32 0.0, %v530
    %532 = vdwg.mxu0
    %v534 = vsel %vm180, %v495, 0
    %536 = vmatpush.msra.mxu0 0.0
    %537 = vmatpush.msra.mxu0 0.0
    %538 = vmatpush.msra.mxu0 0.0
    %539 = vmatpush.msra.mxu0 0.0
    %540 = vmatpush.msra.mxu0 0.0
    %541 = vmatpush.msra.mxu0 0.0
    %542 = vmatpush.msra.mxu0 0.0
    %543 = vmatpush.msra.mxu0 0.0
    %544 = vmatpush.msra.mxu0 0.0
    %545 = vmatpush.msra.mxu0 0.0
    %546 = vmatpush.msra.mxu0 0.0
    %547 = vmatpush.msra.mxu0 0.0
    %548 = vmatpush.msra.mxu0 0.0
    %549 = vmatpush.msra.mxu0 0.0
    %550 = vmatpush.msra.mxu0 0.0
    %551 = vmatpush.msra.mxu0 %v178
    %552 = vmatmul.f32.gmra.mxu0 %v534
    %v553 = vpop.f32.mrf.mxu0
    %v554 = vadd.f32 0.0, %v553
    %555 = vdwg.mxu0
    %557 = vrot.lane.b32.xlu0 %v175, 120
    %v558 = vpop.permute.xlu0 %557
    %v561 = vsel %vm180, %v496, 0
    %563 = vmatpush.msra.mxu0 0.0
    %564 = vmatpush.msra.mxu0 0.0
    %565 = vmatpush.msra.mxu0 0.0
    %566 = vmatpush.msra.mxu0 0.0
    %567 = vmatpush.msra.mxu0 0.0
    %568 = vmatpush.msra.mxu0 0.0
    %569 = vmatpush.msra.mxu0 0.0
    %570 = vmatpush.msra.mxu0 0.0
    %571 = vmatpush.msra.mxu0 0.0
    %572 = vmatpush.msra.mxu0 0.0
    %573 = vmatpush.msra.mxu0 0.0
    %574 = vmatpush.msra.mxu0 0.0
    %575 = vmatpush.msra.mxu0 0.0
    %576 = vmatpush.msra.mxu0 0.0
    %577 = vmatpush.msra.mxu0 0.0
    %578 = vmatpush.msra.mxu0 %v558
    %579 = vmatmul.f32.gmra.mxu0 %v561
    %v580 = vpop.f32.mrf.mxu0
    %v581 = vadd.f32 0.0, %v580
    %582 = vdwg.mxu0
    %584 = vrot.lane.b32.xlu0 %v178, 120
    %v585 = vpop.permute.xlu0 %584
    %v588 = vsel %vm180, %v497, 0
    %590 = vmatpush.msra.mxu0 0.0
    %591 = vmatpush.msra.mxu0 0.0
    %592 = vmatpush.msra.mxu0 0.0
    %593 = vmatpush.msra.mxu0 0.0
    %594 = vmatpush.msra.mxu0 0.0
    %595 = vmatpush.msra.mxu0 0.0
    %596 = vmatpush.msra.mxu0 0.0
    %597 = vmatpush.msra.mxu0 0.0
    %598 = vmatpush.msra.mxu0 0.0
    %599 = vmatpush.msra.mxu0 0.0
    %600 = vmatpush.msra.mxu0 0.0
    %601 = vmatpush.msra.mxu0 0.0
    %602 = vmatpush.msra.mxu0 0.0
    %603 = vmatpush.msra.mxu0 0.0
    %604 = vmatpush.msra.mxu0 0.0
    %605 = vmatpush.msra.mxu0 %v585
    %606 = vmatmul.f32.gmra.mxu0 %v588
    %v607 = vpop.f32.mrf.mxu0
    %v608 = vadd.f32 0.0, %v607
    %609 = vdwg.mxu0
    %610 = vrot.lane.b32.xlu0 %v175, 112
    %v611 = vpop.permute.xlu0 %610
    %v614 = vsel %vm180, %v498, 0
    %616 = vmatpush.msra.mxu0 0.0
    %617 = vmatpush.msra.mxu0 0.0
    %618 = vmatpush.msra.mxu0 0.0
    %619 = vmatpush.msra.mxu0 0.0
    %620 = vmatpush.msra.mxu0 0.0
    %621 = vmatpush.msra.mxu0 0.0
    %622 = vmatpush.msra.mxu0 0.0
    %623 = vmatpush.msra.mxu0 0.0
    %624 = vmatpush.msra.mxu0 0.0
    %625 = vmatpush.msra.mxu0 0.0
    %626 = vmatpush.msra.mxu0 0.0
    %627 = vmatpush.msra.mxu0 0.0
    %628 = vmatpush.msra.mxu0 0.0
    %629 = vmatpush.msra.mxu0 0.0
    %630 = vmatpush.msra.mxu0 0.0
    %631 = vmatpush.msra.mxu0 %v611
    %632 = vmatmul.f32.gmra.mxu0 %v614
    %v633 = vpop.f32.mrf.mxu0
    %v634 = vadd.f32 0.0, %v633
    %635 = vdwg.mxu0
    %636 = vrot.lane.b32.xlu0 %v178, 112
    %v637 = vpop.permute.xlu0 %636
    %v640 = vsel %vm180, %v499, 0
    %642 = vmatpush.msra.mxu0 0.0
    %643 = vmatpush.msra.mxu0 0.0
    %644 = vmatpush.msra.mxu0 0.0
    %645 = vmatpush.msra.mxu0 0.0
    %646 = vmatpush.msra.mxu0 0.0
    %647 = vmatpush.msra.mxu0 0.0
    %648 = vmatpush.msra.mxu0 0.0
    %649 = vmatpush.msra.mxu0 0.0
    %650 = vmatpush.msra.mxu0 0.0
    %651 = vmatpush.msra.mxu0 0.0
    %652 = vmatpush.msra.mxu0 0.0
    %653 = vmatpush.msra.mxu0 0.0
    %654 = vmatpush.msra.mxu0 0.0
    %655 = vmatpush.msra.mxu0 0.0
    %656 = vmatpush.msra.mxu0 0.0
    %657 = vmatpush.msra.mxu0 %v637
    %658 = vmatmul.f32.gmra.mxu0 %v640
    %v659 = vpop.f32.mrf.mxu0
    %v660 = vadd.f32 0.0, %v659
    %661 = vdwg.mxu0
    %662 = vrot.lane.b32.xlu0 %v175, 104
    %v663 = vpop.permute.xlu0 %662
    %v666 = vsel %vm180, %v500, 0
    %668 = vmatpush.msra.mxu0 0.0
    %669 = vmatpush.msra.mxu0 0.0
    %670 = vmatpush.msra.mxu0 0.0
    %671 = vmatpush.msra.mxu0 0.0
    %672 = vmatpush.msra.mxu0 0.0
    %673 = vmatpush.msra.mxu0 0.0
    %674 = vmatpush.msra.mxu0 0.0
    %675 = vmatpush.msra.mxu0 0.0
    %676 = vmatpush.msra.mxu0 0.0
    %677 = vmatpush.msra.mxu0 0.0
    %678 = vmatpush.msra.mxu0 0.0
    %679 = vmatpush.msra.mxu0 0.0
    %680 = vmatpush.msra.mxu0 0.0
    %681 = vmatpush.msra.mxu0 0.0
    %682 = vmatpush.msra.mxu0 0.0
    %683 = vmatpush.msra.mxu0 %v663
    %684 = vmatmul.f32.gmra.mxu0 %v666
    %v685 = vpop.f32.mrf.mxu0
    %v686 = vadd.f32 0.0, %v685
    %687 = vdwg.mxu0
    %688 = vrot.lane.b32.xlu0 %v178, 104
    %v689 = vpop.permute.xlu0 %688
    %v692 = vsel %vm180, %v501, 0
    %694 = vmatpush.msra.mxu0 0.0
    %695 = vmatpush.msra.mxu0 0.0
    %696 = vmatpush.msra.mxu0 0.0
    %697 = vmatpush.msra.mxu0 0.0
    %698 = vmatpush.msra.mxu0 0.0
    %699 = vmatpush.msra.mxu0 0.0
    %700 = vmatpush.msra.mxu0 0.0
    %701 = vmatpush.msra.mxu0 0.0
    %702 = vmatpush.msra.mxu0 0.0
    %703 = vmatpush.msra.mxu0 0.0
    %704 = vmatpush.msra.mxu0 0.0
    %705 = vmatpush.msra.mxu0 0.0
    %706 = vmatpush.msra.mxu0 0.0
    %707 = vmatpush.msra.mxu0 0.0
    %708 = vmatpush.msra.mxu0 0.0
    %709 = vmatpush.msra.mxu0 %v689
    %710 = vmatmul.f32.gmra.mxu0 %v692
    %v711 = vpop.f32.mrf.mxu0
    %v712 = vadd.f32 0.0, %v711
    %713 = vdwg.mxu0
    %716 = vrot.lane.b32.xlu0 %v581, 8
    %v717 = vpop.permute.xlu0 %716
    %718 = vrot.lane.b32.xlu0 %v608, 8
    %v719 = vpop.permute.xlu0 %718
    %724 = vrot.lane.b32.xlu0 %v634, 16
    %v725 = vpop.permute.xlu0 %724
    %726 = vrot.lane.b32.xlu0 %v660, 16
    %v727 = vpop.permute.xlu0 %726
    %732 = vrot.lane.b32.xlu0 %v686, 24
    %v733 = vpop.permute.xlu0 %732
    %734 = vrot.lane.b32.xlu0 %v712, 24
    %v735 = vpop.permute.xlu0 %734
    %v738 = vsel %vm180, %v531, %v717
    %v739 = vsel %vm180, %v554, %v719
    %vm740 = vcmask 130048
    %v741 = vsel %vm740, %v738, %v725
    %v742 = vsel %vm740, %v739, %v727
    %vm743 = vcmask 195584
    %v744 = vsel %vm743, %v741, %v733
    %v745 = vsel %vm743, %v742, %v735
    %s746 = scalar_lea.vmem %s3, 96
    %v747 = vld [vmem:[%s746] sm:$0xff]
    %v748 = vld [vmem:[%s746 + $0x8] sm:$0xff]
    %v749 = vld [vmem:[%s746 + $0x10] sm:$0xff]
    %v750 = vld [vmem:[%s746 + $0x18] sm:$0xff]
    %v751 = vperm.slane %v68, 0
    %v753 = vsel %vm80, %v744, 0
    %v756 = vsel %vm80, %v745, 0
    %758 = vmatpush.msra.mxu0 0.0
    %759 = vmatpush.msra.mxu0 0.0
    %760 = vmatpush.msra.mxu0 0.0
    %761 = vmatpush.msra.mxu0 0.0
    %762 = vmatpush.msra.mxu0 0.0
    %763 = vmatpush.msra.mxu0 0.0
    %764 = vmatpush.msra.mxu0 0.0
    %765 = vmatpush.msra.mxu0 0.0
    %766 = vmatpush.msra.mxu0 0.0
    %767 = vmatpush.msra.mxu0 0.0
    %768 = vmatpush.msra.mxu0 0.0
    %769 = vmatpush.msra.mxu0 0.0
    %770 = vmatpush.msra.mxu0 %v750
    %771 = vmatpush.msra.mxu0 %v749
    %772 = vmatpush.msra.mxu0 %v748
    %773 = vmatpush.msra.mxu0 %v747
    %774 = vmatmul.f32.gmra.mxu0 %v753
    %v775 = vpop.f32.mrf.mxu0
    %v776 = vadd.f32 %v751, %v775
    %777 = vmatmul.f32.gmra.mxu0 %v756
    %v778 = vpop.f32.mrf.mxu0
    %v779 = vadd.f32 %v751, %v778
    %780 = vdwg.mxu0
    %v781 = vadd.f32 %v776, %v59
    %v782 = vadd.f32 %v779, %v60
    %v783 = vsel %vm80, %v781, 0.0
    %784 = vadd.xlane.f32.xlu0 %v783
    %v785 = vpop.xlane.xlu0 %784
    %v786 = vsel %vm80, %v782, 0.0
    %787 = vadd.xlane.f32.xlu0 %v786
    %v788 = vpop.xlane.xlu0 %787
    %v789 = vrcp.pop 32.0
    %v790 = vmul.f32 32.0, %v789
    %v791 = vsub.f32 1.0, %v790
    %v792 = vmul.f32 %v789, %v791
    %v793 = vadd.f32 %v789, %v792
    %vm794 = vweird.f32 %v789
    %v795 = vsel %vm794, %v789, %v793
    %v796 = vmul.f32 %v785, %v795
    %v797 = vmul.f32 %v788, %v795
    %v798 = vsub.f32 %v781, %v796
    %v799 = vsub.f32 %v782, %v797
    %v800 = vmul.f32 %v798, %v798
    %v801 = vmul.f32 %v799, %v799
    %v802 = vsel %vm80, %v800, 0.0
    %803 = vadd.xlane.f32.xlu0 %v802
    %v804 = vpop.xlane.xlu0 %803
    %v805 = vsel %vm80, %v801, 0.0
    %806 = vadd.xlane.f32.xlu0 %v805
    %v807 = vpop.xlane.xlu0 %806
    %v808 = vmul.f32 %v804, %v795
    %v809 = vmul.f32 %v807, %v795
    %v810 = vadd.f32 %v808, 1e-05
    %v811 = vadd.f32 %v809, 1e-05
    %v812 = vrsqrt.pop %v810
    %v813 = vmul.f32 %v812, %v810
    %v814 = vmul.f32 %v813, %v812
    %v815 = vmul.f32 0.5, %v814
    %v816 = vsub.f32 1.5, %v815
    %v817 = vmul.f32 %v812, %v816
    %vm818 = vweird.f32 %v810
    %vm819 = vweird.f32 %v812
    %vm820 = vmor %vm818, %vm819
    %v821 = vsel %vm820, %v812, %v817
    %v822 = vrsqrt.pop %v811
    %v823 = vmul.f32 %v822, %v811
    %v824 = vmul.f32 %v823, %v822
    %v825 = vmul.f32 0.5, %v824
    %v826 = vsub.f32 1.5, %v825
    %v827 = vmul.f32 %v822, %v826
    %vm828 = vweird.f32 %v811
    %vm829 = vweird.f32 %v822
    %vm830 = vmor %vm828, %vm829
    %v831 = vsel %vm830, %v822, %v827
    %v832 = vmul.f32 %v798, %v821
    %v833 = vmul.f32 %v799, %v831
    %v834 = vperm.slane %v71, 0
    %v835 = vmul.f32 %v832, %v834
    %v836 = vmul.f32 %v833, %v834
    %v837 = vperm.slane %v72, 0
    %v838 = vadd.f32 %v835, %v837
    %v839 = vadd.f32 %v836, %v837
    %v840 = vld [vmem:[%s4] sm:$0xff]
    %v841 = vld [vmem:[%s4 + $0x8] sm:$0xff]
    %v842 = vld [vmem:[%s4 + $0x10] sm:$0xff]
    %v843 = vld [vmem:[%s4 + $0x18] sm:$0xff]
    %v844 = vld [vmem:[%s4 + $0x20] sm:$0xff]
    %v845 = vld [vmem:[%s4 + $0x28] sm:$0xff]
    %v846 = vld [vmem:[%s4 + $0x30] sm:$0xff]
    %v847 = vld [vmem:[%s4 + $0x38] sm:$0xff]
    %v848 = vld [vmem:[%s4 + $0x40] sm:$0xff]
    %v849 = vld [vmem:[%s4 + $0x48] sm:$0xff]
    %v850 = vld [vmem:[%s4 + $0x50] sm:$0xff]
    %v851 = vld [vmem:[%s4 + $0x58] sm:$0xff]
    %v852 = vperm.slane %v69, 0
    %v854 = vsel %vm80, %v838, 0
    %v857 = vsel %vm80, %v839, 0
    %859 = vmatpush.msra.mxu0 0.0
    %860 = vmatpush.msra.mxu0 0.0
    %861 = vmatpush.msra.mxu0 0.0
    %862 = vmatpush.msra.mxu0 0.0
    %863 = vmatpush.msra.mxu0 0.0
    %864 = vmatpush.msra.mxu0 0.0
    %865 = vmatpush.msra.mxu0 0.0
    %866 = vmatpush.msra.mxu0 0.0
    %867 = vmatpush.msra.mxu0 0.0
    %868 = vmatpush.msra.mxu0 0.0
    %869 = vmatpush.msra.mxu0 0.0
    %870 = vmatpush.msra.mxu0 0.0
    %871 = vmatpush.msra.mxu0 %v843
    %872 = vmatpush.msra.mxu0 %v842
    %873 = vmatpush.msra.mxu0 %v841
    %874 = vmatpush.msra.mxu0 %v840
    %875 = vmatmul.f32.gmra.mxu0 %v854
    %v876 = vpop.f32.mrf.mxu0
    %v877 = vadd.f32 %v852, %v876
    %878 = vmatmul.f32.gmra.mxu0 %v857
    %v879 = vpop.f32.mrf.mxu0
    %v880 = vadd.f32 %v852, %v879
    %881 = vdwg.mxu0
    %v882 = vmax.f32 %v877, 0.0
    %v883 = vmax.f32 %v880, 0.0
    %v884 = vperm.slane %v70, 0
    %vm885 = vcmask 523264
    %v887 = vsel %vm885, %v882, 0
    %v890 = vsel %vm885, %v883, 0
    %892 = vmatpush.msra.mxu0 0.0
    %893 = vmatpush.msra.mxu0 0.0
    %894 = vmatpush.msra.mxu0 0.0
    %895 = vmatpush.msra.mxu0 0.0
    %896 = vmatpush.msra.mxu0 0.0
    %897 = vmatpush.msra.mxu0 0.0
    %898 = vmatpush.msra.mxu0 0.0
    %899 = vmatpush.msra.mxu0 0.0
    %900 = vmatpush.msra.mxu0 %v851
    %901 = vmatpush.msra.mxu0 %v850
    %902 = vmatpush.msra.mxu0 %v849
    %903 = vmatpush.msra.mxu0 %v848
    %904 = vmatpush.msra.mxu0 %v847
    %905 = vmatpush.msra.mxu0 %v846
    %906 = vmatpush.msra.mxu0 %v845
    %907 = vmatpush.msra.mxu0 %v844
    %908 = vmatmul.f32.gmra.mxu0 %v887
    %v909 = vpop.f32.mrf.mxu0
    %v910 = vadd.f32 %v884, %v909
    %911 = vmatmul.f32.gmra.mxu0 %v890
    %v912 = vpop.f32.mrf.mxu0
    %v913 = vadd.f32 %v884, %v912
    %914 = vdwg.mxu0
    %v915 = vadd.f32 %v838, %v910
    %v916 = vadd.f32 %v839, %v913
    %v917 = vsel %vm80, %v915, 0.0
    %918 = vadd.xlane.f32.xlu0 %v917
    %v919 = vpop.xlane.xlu0 %918
    %v920 = vsel %vm80, %v916, 0.0
    %921 = vadd.xlane.f32.xlu0 %v920
    %v922 = vpop.xlane.xlu0 %921
    %v923 = vmul.f32 %v919, %v795
    %v924 = vmul.f32 %v922, %v795
    %v925 = vsub.f32 %v915, %v923
    %v926 = vsub.f32 %v916, %v924
    %v927 = vmul.f32 %v925, %v925
    %v928 = vmul.f32 %v926, %v926
    %v929 = vsel %vm80, %v927, 0.0
    %930 = vadd.xlane.f32.xlu0 %v929
    %v931 = vpop.xlane.xlu0 %930
    %v932 = vsel %vm80, %v928, 0.0
    %933 = vadd.xlane.f32.xlu0 %v932
    %v934 = vpop.xlane.xlu0 %933
    %v935 = vmul.f32 %v931, %v795
    %v936 = vmul.f32 %v934, %v795
    %v937 = vadd.f32 %v935, 1e-05
    %v938 = vadd.f32 %v936, 1e-05
    %v939 = vrsqrt.pop %v937
    %v940 = vmul.f32 %v939, %v937
    %v941 = vmul.f32 %v940, %v939
    %v942 = vmul.f32 0.5, %v941
    %v943 = vsub.f32 1.5, %v942
    %v944 = vmul.f32 %v939, %v943
    %vm945 = vweird.f32 %v937
    %vm946 = vweird.f32 %v939
    %vm947 = vmor %vm945, %vm946
    %v948 = vsel %vm947, %v939, %v944
    %v949 = vrsqrt.pop %v938
    %v950 = vmul.f32 %v949, %v938
    %v951 = vmul.f32 %v950, %v949
    %v952 = vmul.f32 0.5, %v951
    %v953 = vsub.f32 1.5, %v952
    %v954 = vmul.f32 %v949, %v953
    %vm955 = vweird.f32 %v938
    %vm956 = vweird.f32 %v949
    %vm957 = vmor %vm955, %vm956
    %v958 = vsel %vm957, %v949, %v954
    %v959 = vmul.f32 %v925, %v948
    %v960 = vmul.f32 %v926, %v958
    %v961 = vperm.slane %v73, 0
    %v962 = vmul.f32 %v959, %v961
    %v963 = vmul.f32 %v960, %v961
    %v964 = vperm.slane %v74, 0
    %v965 = vadd.f32 %v962, %v964
    %v966 = vadd.f32 %v963, %v964
    %967 = vst.msk [vmem:[#allocation7] sm:$0xff] %vm80, %v965
    %968 = vst.msk [vmem:[#allocation7 + $0x8] sm:$0xff] %vm80, %v966
    // Predicated region
    $region34: #{encoder_forward.1} parent=1 // pred_check
      _
    $region35: #{encoder_forward.1} parent=1 // pred_check_branch
      %970 = sbr.rel (0) target = $region37
    $region36: #{encoder_forward.1} parent=1 // pred_region
      %972 = vsyncadd [#allocation4], 0
      %s973 = sshll.u32 [#allocation7], 4
      %s974 = int_to_ptr.vmem [resolvable:$true] %s973
      %s975 = sshll.u32 %s6, 4
      %s976 = int_to_ptr.hbm [resolvable:$true] %s975
      %981 = dma.vmem_to_hbm [thread:$0]  %s974, 256, %s976, [#allocation4], 128, 128, 8
    $region37: #{encoder_forward.1} parent=1 // pred_fallthru
      _
    // Predicated region
    $region38: #{encoder_forward.1} parent=1 // pred_check
      _
    $region39: #{encoder_forward.1} parent=1 // pred_check_branch
      %983 = sbr.rel (0) target = $region41
    $region40: #{encoder_forward.1} parent=1 // pred_region
      %985 = vsyncadd [#allocation9], 0
      %s986 = sshll.u32 [#allocation8], 4
      %s987 = int_to_ptr.vmem [resolvable:$true] %s986
      %s988 = sshll.u32 %s7, 4
      %s989 = int_to_ptr.hbm [resolvable:$true] %s988
      %994 = dma.vmem_to_hbm [thread:$0]  %s987, 1024, %s989, [#allocation9], 128, 128, 8
    $region41: #{encoder_forward.1} parent=1 // pred_fallthru
      _
    // Predicated region
    $region42: #{encoder_forward.1} parent=1 // pred_check
      _
    $region43: #{encoder_forward.1} parent=1 // pred_check_branch
      %996 = sbr.rel (0) target = $region45
    $region44: #{encoder_forward.1} parent=1 // pred_region
      %998 = dma.done [#allocation4], 256
    $region45: #{encoder_forward.1} parent=1 // pred_fallthru
      _
    // Predicated region
    $region46: #{encoder_forward.1} parent=1 // pred_check
      _
    $region47: #{encoder_forward.1} parent=1 // pred_check_branch
      %1000 = sbr.rel (0) target = $region49
    $region48: #{encoder_forward.1} parent=1 // pred_region
      %1002 = dma.done [#allocation9], 1024
    $region49: #{encoder_forward.1} parent=1 // pred_fallthru
      _
    %1003 = vsyncpa [#allocation3], 1
    %1004 = vsyncpa [#allocation6], 1
    %1005 = vsyncpa [#allocation4], 1
    %1006 = vsyncpa [#allocation9], 1

</llo_original>
